<compile_context>
chip_gen: v7x
topology: tpu7x:2x2x1
jax: 0.10.0
libtpu: 0.0.40
codegen_flags: <defaults>
</compile_context>

<pallas_src>
import numpy as np
import jax
import jax.numpy as jnp
from jax.experimental import pallas as pl
from jax.experimental.pallas import tpu as pltpu


# ---------------- problem sizes (derived exactly as in the PyTorch script) ---
def contiguous_intervals(n):
    regions = []
    for length in range(1, n):
        for start in range(0, n - length + 1):
            regions.append(tuple(range(start, start + length)))
    return regions


CFG = {'n_qubits': 8}
TREE_HEIGHT = int(np.log2(CFG['n_qubits']))          # 3
NUM_NODES = 2 ** (TREE_HEIGHT + 1) - 1               # 15 (balanced_tree(r=2,h=3))
NUM_EDGES = NUM_NODES - 1                            # 14
NUM_INTERVALS = len(contiguous_intervals(CFG['n_qubits']))  # 35
HIDDEN = 64


def _round_up(x, m):
    return ((x + m - 1) // m) * m


# ---------------- Pallas kernel: fused 3-layer MLP on one batch tile ---------
def mlp_kernel(x_ref, w1_ref, b1_ref, w2_ref, b2_ref, w3_ref, b3_ref, o_ref):
    x = x_ref[...]                                   # (TB, NUM_INTERVALS)

    h1 = jnp.dot(x, w1_ref[...], preferred_element_type=jnp.float32) + b1_ref[...]
    h1 = jnp.maximum(h1, 0.0)                        # ReLU (f32)

    h2 = jnp.dot(h1.astype(w2_ref.dtype), w2_ref[...],
                 preferred_element_type=jnp.float32) + b2_ref[...]
    h2 = jnp.maximum(h2, 0.0)                        # ReLU (f32)

    z = jnp.dot(h2.astype(w3_ref.dtype), w3_ref[...],
                preferred_element_type=jnp.float32) + b3_ref[...]   # (TB, 14)

    # Softplus, PyTorch default semantics (beta=1, threshold=20):
    #   softplus(z) = z                if z > 20
    #               = log(1 + exp(z))  otherwise
    sp = jnp.log1p(jnp.exp(jnp.minimum(z, 20.0)))
    o_ref[...] = jnp.where(z > 20.0, z, sp)          # narrow (TB, 14) store


# ---------------- dimension semantics: CORE_PARALLEL only where it helps -----
def _batch_dim_semantics(num_blocks):
    kind = ""
    try:
        kind = jax.devices()[0].device_kind or ""
    except Exception:
        pass
    # v7x is the only generation with 2 TensorCores per chip; plain "parallel"
    # has near-zero effect there, CORE_PARALLEL actually splits the grid.
    if "7" in kind and num_blocks % 2 == 0:
        return (pltpu.CORE_PARALLEL,)
    return (pltpu.PARALLEL,)


# ---------------- wrapper: padding, BlockSpecs, pipelined grid ---------------
def interval_to_edge_mlp(x, w1, b1, w2, b2, w3, b3, *,
                         batch_tile=2048, use_bf16=False):
    B = x.shape[0]

    # Batch tile: multiple of 8 sublanes, capped by batch_tile.  At TB=2048 the
    # double-buffered x/out tiles plus (TB,64)/(TB,14) temps are well under the
    # explicit 48 MiB VMEM limit on every generation (incl. v7x's 64 MiB/TC).
    TB = min(_round_up(batch_tile, 8), _round_up(max(B, 8), 8))
    Bp = _round_up(B, TB)
    if Bp != B:
        x_in = jnp.zeros((Bp, NUM_INTERVALS), x.dtype).at[:B].set(x)
    else:
        x_in = x

    if use_bf16:
        # Optional: halve x DMA + weight footprint; accumulation stays f32.
        x_in = x_in.astype(jnp.bfloat16)
        w1 = w1.astype(jnp.bfloat16)
        w2 = w2.astype(jnp.bfloat16)
        w3 = w3.astype(jnp.bfloat16)

    num_blocks = Bp // TB
    grid = (num_blocks,)

    # Advisory cost estimate (uses the true 14-wide output, not a padded one).
    flops = 2 * Bp * (NUM_INTERVALS * HIDDEN + HIDDEN * HIDDEN + HIDDEN * NUM_EDGES)
    transcendentals = 2 * Bp * NUM_EDGES             # exp + log1p per output elem
    xbytes = jnp.dtype(x_in.dtype).itemsize
    wbytes = jnp.dtype(w1.dtype).itemsize
    bytes_accessed = (
        Bp * NUM_INTERVALS * xbytes + Bp * NUM_EDGES * 4
        + (NUM_INTERVALS * HIDDEN + HIDDEN * HIDDEN + HIDDEN * NUM_EDGES) * wbytes
        + (HIDDEN + HIDDEN + NUM_EDGES) * 4
    )

    # Weights/biases: constant index_map -> VMEM-resident across all grid steps.
    resident = lambda shape: pl.BlockSpec(shape, lambda i: (0,) * len(shape))

    out = pl.pallas_call(
        mlp_kernel,
        out_shape=jax.ShapeDtypeStruct((Bp, NUM_EDGES), jnp.float32),
        grid=grid,
        in_specs=[
            pl.BlockSpec((TB, NUM_INTERVALS), lambda i: (i, 0)),   # streamed per tile
            resident(w1.shape), resident(b1.shape),
            resident(w2.shape), resident(b2.shape),
            resident(w3.shape), resident(b3.shape),
        ],
        out_specs=pl.BlockSpec((TB, NUM_EDGES), lambda i: (i, 0)),  # narrow writeback
        compiler_params=pltpu.CompilerParams(
            dimension_semantics=_batch_dim_semantics(num_blocks),
            vmem_limit_bytes=48 * 1024 * 1024),
        cost_estimate=pl.CostEstimate(
            flops=flops, transcendentals=transcendentals,
            bytes_accessed=bytes_accessed),
    )(x_in, w1, b1, w2, b2, w3, b3)

    # Only a cheap row slice when the batch had to be padded; no column slice.
    if Bp != B:
        out = out[:B]
    return out


# ---------------- deterministic parameter init (PyTorch-style uniform) -------
def init_linear(key, fan_in, fan_out):
    kw, kb = jax.random.split(key)
    bound = 1.0 / np.sqrt(fan_in)
    w = jax.random.uniform(kw, (fan_in, fan_out), jnp.float32, -bound, bound)
    b = jax.random.uniform(kb, (1, fan_out), jnp.float32, -bound, bound)
    return w, b


def _reference(x, w1, b1, w2, b2, w3, b3):
    h1 = jnp.maximum(x @ w1 + b1, 0.0)
    h2 = jnp.maximum(h1 @ w2 + b2, 0.0)
    z = h2 @ w3 + b3
    return jnp.where(z > 20.0, z, jnp.log1p(jnp.exp(jnp.minimum(z, 20.0))))


if __name__ == "__main__":
    key = jax.random.PRNGKey(0)
    k_x, k_x2, k1, k2, k3 = jax.random.split(key, 5)

    w1, b1 = init_linear(k1, NUM_INTERVALS, HIDDEN)
    w2, b2 = init_linear(k2, HIDDEN, HIDDEN)
    w3, b3 = init_linear(k3, HIDDEN, NUM_EDGES)

    # Small batch of interval-entropy vectors.
    B = 8
    x = jax.random.normal(k_x, (B, NUM_INTERVALS), jnp.float32)
    out = jax.block_until_ready(interval_to_edge_mlp(x, w1, b1, w2, b2, w3, b3))
    ref = _reference(x, w1, b1, w2, b2, w3, b3)
    np.testing.assert_allclose(np.asarray(out), np.asarray(ref), rtol=1e-5, atol=1e-5)

    # Ragged batch (not a multiple of 8 / tile) exercises the padding + row-slice path.
    B2 = 19
    x2 = jax.random.normal(k_x2, (B2, NUM_INTERVALS), jnp.float32)
    out2 = jax.block_until_ready(
        interval_to_edge_mlp(x2, w1, b1, w2, b2, w3, b3, batch_tile=8))
    ref2 = _reference(x2, w1, b1, w2, b2, w3, b3)
    np.testing.assert_allclose(np.asarray(out2), np.asarray(ref2), rtol=1e-5, atol=1e-5)

    print("KERNEL_OK")
</pallas_src>

<mosaic_0001>
module attributes {stable_mosaic.version = 11 : i64} {
  func.func @mlp_kernel(%arg0: i32, %arg1: memref<8x35xf32, #tpu.memory_space<vmem>>, %arg2: memref<35x64xf32, #tpu.memory_space<vmem>>, %arg3: memref<1x64xf32, #tpu.memory_space<vmem>>, %arg4: memref<64x64xf32, #tpu.memory_space<vmem>>, %arg5: memref<1x64xf32, #tpu.memory_space<vmem>>, %arg6: memref<64x14xf32, #tpu.memory_space<vmem>>, %arg7: memref<1x14xf32, #tpu.memory_space<vmem>>, %arg8: memref<8x14xf32, #tpu.memory_space<vmem>>) attributes {dimension_semantics = [#tpu.dimension_semantics<parallel>], iteration_bounds = array<i64: 1>, scalar_prefetch = 0 : i64, scratch_operands = 0 : i64, tpu.core_type = #tpu.core_type<tc>, window_params = [{transform_indices = @transform_0, window_bounds = array<i64: 8, 35>}, {pipeline_mode = #tpu.pipeline_mode<synchronous>, transform_indices = @transform_1, window_bounds = array<i64: 35, 64>}, {pipeline_mode = #tpu.pipeline_mode<synchronous>, transform_indices = @transform_2, window_bounds = array<i64: 1, 64>}, {pipeline_mode = #tpu.pipeline_mode<synchronous>, transform_indices = @transform_3, window_bounds = array<i64: 64, 64>}, {pipeline_mode = #tpu.pipeline_mode<synchronous>, transform_indices = @transform_4, window_bounds = array<i64: 1, 64>}, {pipeline_mode = #tpu.pipeline_mode<synchronous>, transform_indices = @transform_5, window_bounds = array<i64: 64, 14>}, {pipeline_mode = #tpu.pipeline_mode<synchronous>, transform_indices = @transform_6, window_bounds = array<i64: 1, 14>}, {transform_indices = @transform_7, window_bounds = array<i64: 8, 14>}]} {
    %c0 = arith.constant 0 : index
    %c0_0 = arith.constant 0 : index
    %0 = vector.load %arg1[%c0, %c0_0] : memref<8x35xf32, #tpu.memory_space<vmem>>, vector<8x35xf32>
    %c0_1 = arith.constant 0 : index
    %c0_2 = arith.constant 0 : index
    %1 = vector.load %arg2[%c0_1, %c0_2] : memref<35x64xf32, #tpu.memory_space<vmem>>, vector<35x64xf32>
    %cst = arith.constant dense<0.000000e+00> : vector<8x64xf32>
    %2 = tpu.matmul %0, %1, %cst {dimension_numbers = #tpu.dot_dimension_numbers<[1], [0], [0], [1], [0, 0, 1, 1], [], []>} : vector<8x35xf32>, vector<35x64xf32>, vector<8x64xf32> -> vector<8x64xf32>
    %c0_3 = arith.constant 0 : index
    %c0_4 = arith.constant 0 : index
    %3 = vector.load %arg3[%c0_3, %c0_4] : memref<1x64xf32, #tpu.memory_space<vmem>>, vector<1x64xf32>
    %4 = vector.broadcast %3 : vector<1x64xf32> to vector<8x64xf32>
    %5 = arith.addf %2, %4 : vector<8x64xf32>
    %cst_5 = arith.constant 0.000000e+00 : f32
    %6 = vector.broadcast %cst_5 : f32 to vector<8x64xf32>
    %7 = arith.maximumf %5, %6 : vector<8x64xf32>
    %c0_6 = arith.constant 0 : index
    %c0_7 = arith.constant 0 : index
    %8 = vector.load %arg4[%c0_6, %c0_7] : memref<64x64xf32, #tpu.memory_space<vmem>>, vector<64x64xf32>
    %cst_8 = arith.constant dense<0.000000e+00> : vector<8x64xf32>
    %9 = tpu.matmul %7, %8, %cst_8 {dimension_numbers = #tpu.dot_dimension_numbers<[1], [0], [0], [1], [0, 0, 1, 1], [], []>} : vector<8x64xf32>, vector<64x64xf32>, vector<8x64xf32> -> vector<8x64xf32>
    %c0_9 = arith.constant 0 : index
    %c0_10 = arith.constant 0 : index
    %10 = vector.load %arg5[%c0_9, %c0_10] : memref<1x64xf32, #tpu.memory_space<vmem>>, vector<1x64xf32>
    %11 = vector.broadcast %10 : vector<1x64xf32> to vector<8x64xf32>
    %12 = arith.addf %9, %11 : vector<8x64xf32>
    %cst_11 = arith.constant 0.000000e+00 : f32
    %13 = vector.broadcast %cst_11 : f32 to vector<8x64xf32>
    %14 = arith.maximumf %12, %13 : vector<8x64xf32>
    %c0_12 = arith.constant 0 : index
    %c0_13 = arith.constant 0 : index
    %15 = vector.load %arg6[%c0_12, %c0_13] : memref<64x14xf32, #tpu.memory_space<vmem>>, vector<64x14xf32>
    %cst_14 = arith.constant dense<0.000000e+00> : vector<8x14xf32>
    %16 = tpu.matmul %14, %15, %cst_14 {dimension_numbers = #tpu.dot_dimension_numbers<[1], [0], [0], [1], [0, 0, 1, 1], [], []>} : vector<8x64xf32>, vector<64x14xf32>, vector<8x14xf32> -> vector<8x14xf32>
    %c0_15 = arith.constant 0 : index
    %c0_16 = arith.constant 0 : index
    %17 = vector.load %arg7[%c0_15, %c0_16] : memref<1x14xf32, #tpu.memory_space<vmem>>, vector<1x14xf32>
    %18 = vector.broadcast %17 : vector<1x14xf32> to vector<8x14xf32>
    %19 = arith.addf %16, %18 : vector<8x14xf32>
    %cst_17 = arith.constant 2.000000e+01 : f32
    %20 = vector.broadcast %cst_17 : f32 to vector<8x14xf32>
    %21 = arith.minimumf %19, %20 : vector<8x14xf32>
    %22 = math.exp %21 : vector<8x14xf32>
    %23 = math.log1p %22 : vector<8x14xf32>
    %cst_18 = arith.constant 2.000000e+01 : f32
    %24 = vector.broadcast %cst_18 : f32 to vector<8x14xf32>
    %25 = arith.cmpf ogt, %19, %24 : vector<8x14xf32>
    %26 = arith.select %25, %19, %23 : vector<8x14xi1>, vector<8x14xf32>
    %c0_19 = arith.constant 0 : index
    %c0_20 = arith.constant 0 : index
    %27 = vector.load %arg8[%c0_19, %c0_20] : memref<8x14xf32, #tpu.memory_space<vmem>>, vector<8x14xf32>
    tpu.vector_store %arg8[%c0_19, %c0_20], %26 {strides = array<i32>} : memref<8x14xf32, #tpu.memory_space<vmem>>, vector<8x14xf32>,
    return
  }
  func.func @transform_0(%arg0: i32) -> (i32, i32) {
    %c0_i32 = arith.constant 0 : i32
    %c0_i32_0 = arith.constant 0 : i32
    return %arg0, %c0_i32 : i32, i32
  }
  func.func @transform_1(%arg0: i32) -> (i32, i32) {
    %c0_i32 = arith.constant 0 : i32
    %c0_i32_0 = arith.constant 0 : i32
    %c0_i32_1 = arith.constant 0 : i32
    return %c0_i32, %c0_i32_0 : i32, i32
  }
  func.func @transform_2(%arg0: i32) -> (i32, i32) {
    %c0_i32 = arith.constant 0 : i32
    %c0_i32_0 = arith.constant 0 : i32
    %c0_i32_1 = arith.constant 0 : i32
    return %c0_i32, %c0_i32_0 : i32, i32
  }
  func.func @transform_3(%arg0: i32) -> (i32, i32) {
    %c0_i32 = arith.constant 0 : i32
    %c0_i32_0 = arith.constant 0 : i32
    %c0_i32_1 = arith.constant 0 : i32
    return %c0_i32, %c0_i32_0 : i32, i32
  }
  func.func @transform_4(%arg0: i32) -> (i32, i32) {
    %c0_i32 = arith.constant 0 : i32
    %c0_i32_0 = arith.constant 0 : i32
    %c0_i32_1 = arith.constant 0 : i32
    return %c0_i32, %c0_i32_0 : i32, i32
  }
  func.func @transform_5(%arg0: i32) -> (i32, i32) {
    %c0_i32 = arith.constant 0 : i32
    %c0_i32_0 = arith.constant 0 : i32
    %c0_i32_1 = arith.constant 0 : i32
    return %c0_i32, %c0_i32_0 : i32, i32
  }
  func.func @transform_6(%arg0: i32) -> (i32, i32) {
    %c0_i32 = arith.constant 0 : i32
    %c0_i32_0 = arith.constant 0 : i32
    %c0_i32_1 = arith.constant 0 : i32
    return %c0_i32, %c0_i32_0 : i32, i32
  }
  func.func @transform_7(%arg0: i32) -> (i32, i32) {
    %c0_i32 = arith.constant 0 : i32
    %c0_i32_0 = arith.constant 0 : i32
    return %arg0, %c0_i32 : i32, i32
  }
}

</mosaic_0001>

<llo_original>
// kernel: tpu_custom_call.1
$region0: #{tpu_custom_call.1}
  #allocation0 [shape = 'u32[]', space=smem, size = 0x4, offset = 0x4, fixed_abs, tag = 'smem constant byte address 0x4 - core index']
  #allocation1 [shape = 'u32[144,128]{1,0:T(1,128)}', space=vmem, size = 0x12000, scoped, tag = 'internal scratch']
  %s0 = inlined_call_operand.vmem [shape: f32[8,35], index: 0, kind: input, shape index: {}]
  %s1 = inlined_call_operand.hbm [shape: f32[35,64], index: 1, kind: input, shape index: {}]
  %s2 = inlined_call_operand.vmem [shape: f32[1,64], index: 2, kind: input, shape index: {}]
  %s3 = inlined_call_operand.vmem [shape: f32[64,64], index: 3, kind: input, shape index: {}]
  %s4 = inlined_call_operand.vmem [shape: f32[1,64], index: 4, kind: input, shape index: {}]
  %s5 = inlined_call_operand.vmem [shape: f32[64,14], index: 5, kind: input, shape index: {}]
  %s6 = inlined_call_operand.vmem [shape: f32[1,14], index: 6, kind: input, shape index: {}]
  %s7 = inlined_call_operand.hbm [shape: f32[8,14], index: 7, kind: output, shape index: {}]
  %s8 = sld [smem:[#allocation0]]
  $region42: #{tpu_custom_call.1} parent=0
    _
  %s10 = ssub.s32 1, %s8
  %s11 = scalar_select 0, %s10, %s8
  $region1: #{tpu_custom_call.1} parent=0
    #allocation2 [shape = 'u8[20480]{0}', space=vmem, size = 0x5000, scoped, tag = 'input window, operand 1, single buffered']
    #allocation3 [shape = 's32[1]{0}', space=sflag, size = 0x4, scoped, tag = 'scoped memory for tpu_custom_call.1']
    #allocation4 [shape = 's32[1]{0}', space=sflag, size = 0x4, scoped, tag = 'scoped memory for tpu_custom_call.1']
    #allocation5 [shape = 'u8[4096]{0}', space=vmem, size = 0x1000, scoped, tag = 'output window, operand 0, single buffered']
    %12 = vsyncpa [#allocation3], 0
    %13 = vsyncpa [#allocation4], 0
    // Predicated region
    $region2: #{tpu_custom_call.1} parent=1 // pred_check
      _
    $region3: #{tpu_custom_call.1} parent=1 // pred_check_branch
      %15 = sbr.rel (0) target = $region5
    $region4: #{tpu_custom_call.1} parent=1 // pred_region
      _
    $region5: #{tpu_custom_call.1} parent=1 // pred_fallthru
      _
    // Predicated region
    $region6: #{tpu_custom_call.1} parent=1 // pred_check
      _
    $region7: #{tpu_custom_call.1} parent=1 // pred_check_branch
      %17 = sbr.rel (0) target = $region9
    $region8: #{tpu_custom_call.1} parent=1 // pred_region
      %s19 = ssub.s32 640, 640
      %20 = vsyncadd [#allocation3], %s19
      %s21 = sshll.u32 [#allocation2], 4
      %s22 = int_to_ptr.vmem [resolvable:$true] %s21
      %27 = dma.hbm_to_vmem [thread:$0]  %s1, 640, %s22, [#allocation3], 128, 128, 8
    $region9: #{tpu_custom_call.1} parent=1 // pred_fallthru
      _
    // Predicated region
    $region10: #{tpu_custom_call.1} parent=1 // pred_check
      _
    $region11: #{tpu_custom_call.1} parent=1 // pred_check_branch
      %29 = sbr.rel (0) target = $region13
    $region12: #{tpu_custom_call.1} parent=1 // pred_region
      _
    $region13: #{tpu_custom_call.1} parent=1 // pred_fallthru
      _
    // Predicated region
    $region14: #{tpu_custom_call.1} parent=1 // pred_check
      _
    $region15: #{tpu_custom_call.1} parent=1 // pred_check_branch
      %31 = sbr.rel (0) target = $region17
    $region16: #{tpu_custom_call.1} parent=1 // pred_region
      _
    $region17: #{tpu_custom_call.1} parent=1 // pred_fallthru
      _
    // Predicated region
    $region18: #{tpu_custom_call.1} parent=1 // pred_check
      _
    $region19: #{tpu_custom_call.1} parent=1 // pred_check_branch
      %33 = sbr.rel (0) target = $region21
    $region20: #{tpu_custom_call.1} parent=1 // pred_region
      _
    $region21: #{tpu_custom_call.1} parent=1 // pred_fallthru
      _
    // Predicated region
    $region22: #{tpu_custom_call.1} parent=1 // pred_check
      _
    $region23: #{tpu_custom_call.1} parent=1 // pred_check_branch
      %35 = sbr.rel (0) target = $region25
    $region24: #{tpu_custom_call.1} parent=1 // pred_region
      _
    $region25: #{tpu_custom_call.1} parent=1 // pred_fallthru
      _
    // Predicated region
    $region26: #{tpu_custom_call.1} parent=1 // pred_check
      _
    $region27: #{tpu_custom_call.1} parent=1 // pred_check_branch
      %37 = sbr.rel (0) target = $region29
    $region28: #{tpu_custom_call.1} parent=1 // pred_region
      _
    $region29: #{tpu_custom_call.1} parent=1 // pred_fallthru
      _
    // Predicated region
    $region30: #{tpu_custom_call.1} parent=1 // pred_check
      _
    $region31: #{tpu_custom_call.1} parent=1 // pred_check_branch
      %39 = sbr.rel (0) target = $region33
    $region32: #{tpu_custom_call.1} parent=1 // pred_region
      %40 = dma.done [#allocation3], 640
    $region33: #{tpu_custom_call.1} parent=1 // pred_fallthru
      _
    %v41 = vld [vmem:[%s0] sm:$0xff]
    %v42 = vld [vmem:[#allocation2] sm:$0xff]
    %v43 = vld [vmem:[#allocation2 + $0x8] sm:$0xff]
    %v44 = vld [vmem:[#allocation2 + $0x10] sm:$0xff]
    %v45 = vld [vmem:[#allocation2 + $0x18] sm:$0xff]
    %v46 = vld [vmem:[#allocation2 + $0x20] sm:$0x7]
    %v47 = vld [vmem:[%s2] sm:$0x1]
    %v49 = vlaneseq
    %v50 = vshrl.u32 %v49, 7
    %v51 = vsub.s32 0, %v50
    %v52 = vrot.slane %v47, %v51
    %vm54 = vcmask 285696
    %v56 = vsel %vm54, %v41, 0
    %vm58 = vcmask 1042432
    %v60 = vsel %vm58, %v46, 0
    %62 = vmatprep.subr.mxu0 0.0
    %63 = vmatpush1.msra.mxu0 %v42
    %64 = vmatprep.subr.mxu0 0.0
    %65 = vmatpush1.msra.mxu0 %v43
    %66 = vmatprep.subr.mxu0 0.0
    %67 = vmatpush1.msra.mxu0 %v44
    %68 = vmatprep.subr.mxu0 0.0
    %69 = vmatpush1.msra.mxu0 %v45
    %70 = vmatprep.subr.mxu0 0.0
    %71 = vmatpush1.msra.mxu0 %v60
    %72 = vmatprep.subr.mxu0 0.0
    %73 = vmatpush1.msra.mxu0 0.0
    %74 = vmatprep.subr.mxu0 0.0
    %75 = vmatpush1.msra.mxu0 0.0
    %76 = vmatprep.subr.mxu0 0.0
    %77 = vmatpush1.msra.mxu0 0.0
    %78 = vmatprep.subr.mxu0 0.0
    %79 = vmatpush1.msra.mxu0 0.0
    %80 = vmatprep.subr.mxu0 0.0
    %81 = vmatpush1.msra.mxu0 0.0
    %82 = vmatprep.subr.mxu0 0.0
    %83 = vmatpush1.msra.mxu0 0.0
    %84 = vmatprep.subr.mxu0 0.0
    %85 = vmatpush1.msra.mxu0 0.0
    %86 = vmatprep.subr.mxu0 0.0
    %87 = vmatpush1.msra.mxu0 0.0
    %88 = vmatprep.subr.mxu0 0.0
    %89 = vmatpush1.msra.mxu0 0.0
    %90 = vmatprep.subr.mxu0 0.0
    %91 = vmatpush1.msra.mxu0 0.0
    %92 = vmatprep.subr.mxu0 0.0
    %93 = vmatpush1.msra.mxu0 0.0
    %94 = vmatprep.subr.mxu0 0.0
    %95 = vmatpush1.msra.mxu0 0.0
    %96 = vmatprep.subr.mxu0 0.0
    %97 = vmatpush1.msra.mxu0 0.0
    %98 = vmatprep.subr.mxu0 0.0
    %99 = vmatpush1.msra.mxu0 0.0
    %100 = vmatprep.subr.mxu0 0.0
    %101 = vmatpush1.msra.mxu0 0.0
    %102 = vmatprep.subr.mxu0 0.0
    %103 = vmatpush1.msra.mxu0 0.0
    %104 = vmatprep.subr.mxu0 0.0
    %105 = vmatpush1.msra.mxu0 0.0
    %106 = vmatprep.subr.mxu0 0.0
    %107 = vmatpush1.msra.mxu0 0.0
    %108 = vmatprep.subr.mxu0 0.0
    %109 = vmatpush1.msra.mxu0 0.0
    %110 = vmatprep.subr.mxu0 0.0
    %111 = vmatpush1.msra.mxu0 0.0
    %112 = vmatprep.subr.mxu0 0.0
    %113 = vmatpush1.msra.mxu0 0.0
    %114 = vmatprep.subr.mxu0 0.0
    %115 = vmatpush1.msra.mxu0 0.0
    %116 = vmatprep.subr.mxu0 0.0
    %117 = vmatpush1.msra.mxu0 0.0
    %118 = vmatprep.subr.mxu0 0.0
    %119 = vmatpush1.msra.mxu0 0.0
    %120 = vmatprep.subr.mxu0 0.0
    %121 = vmatpush1.msra.mxu0 0.0
    %122 = vmatprep.subr.mxu0 0.0
    %123 = vmatpush1.msra.mxu0 0.0
    %124 = vmatprep.subr.mxu0 0.0
    %125 = vmatpush1.msra.mxu0 0.0
    %126 = vmatprep.mubr.f32.mxu0 0.0
    %127 = vmatmul.mubr.f32.gmra.mrb[0].mxu0 %v56
    %v128 = vpop.f32.mrb[0].mxu0
    %v129 = vadd.f32 %v52, %v128
    %v130 = vpop.f32.mrb[0].mxu0
    %131 = vdwg.mxu0
    %v132 = vmax.f32 %v129, 0.0
    %v133 = vld [vmem:[%s3] sm:$0xff]
    %v134 = vld [vmem:[%s3 + $0x8] sm:$0xff]
    %v135 = vld [vmem:[%s3 + $0x10] sm:$0xff]
    %v136 = vld [vmem:[%s3 + $0x18] sm:$0xff]
    %v137 = vld [vmem:[%s3 + $0x20] sm:$0xff]
    %v138 = vld [vmem:[%s3 + $0x28] sm:$0xff]
    %v139 = vld [vmem:[%s3 + $0x30] sm:$0xff]
    %v140 = vld [vmem:[%s3 + $0x38] sm:$0xff]
    %v141 = vld [vmem:[%s4] sm:$0x1]
    %v143 = vlaneseq
    %v144 = vshrl.u32 %v143, 7
    %v145 = vsub.s32 0, %v144
    %v146 = vrot.slane %v141, %v145
    %vm148 = vcmask 523264
    %v150 = vsel %vm148, %v132, 0
    %152 = vmatprep.subr.mxu0 0.0
    %153 = vmatpush1.msra.mxu0 %v133
    %154 = vmatprep.subr.mxu0 0.0
    %155 = vmatpush1.msra.mxu0 %v134
    %156 = vmatprep.subr.mxu0 0.0
    %157 = vmatpush1.msra.mxu0 %v135
    %158 = vmatprep.subr.mxu0 0.0
    %159 = vmatpush1.msra.mxu0 %v136
    %160 = vmatprep.subr.mxu0 0.0
    %161 = vmatpush1.msra.mxu0 %v137
    %162 = vmatprep.subr.mxu0 0.0
    %163 = vmatpush1.msra.mxu0 %v138
    %164 = vmatprep.subr.mxu0 0.0
    %165 = vmatpush1.msra.mxu0 %v139
    %166 = vmatprep.subr.mxu0 0.0
    %167 = vmatpush1.msra.mxu0 %v140
    %168 = vmatprep.subr.mxu0 0.0
    %169 = vmatpush1.msra.mxu0 0.0
    %170 = vmatprep.subr.mxu0 0.0
    %171 = vmatpush1.msra.mxu0 0.0
    %172 = vmatprep.subr.mxu0 0.0
    %173 = vmatpush1.msra.mxu0 0.0
    %174 = vmatprep.subr.mxu0 0.0
    %175 = vmatpush1.msra.mxu0 0.0
    %176 = vmatprep.subr.mxu0 0.0
    %177 = vmatpush1.msra.mxu0 0.0
    %178 = vmatprep.subr.mxu0 0.0
    %179 = vmatpush1.msra.mxu0 0.0
    %180 = vmatprep.subr.mxu0 0.0
    %181 = vmatpush1.msra.mxu0 0.0
    %182 = vmatprep.subr.mxu0 0.0
    %183 = vmatpush1.msra.mxu0 0.0
    %184 = vmatprep.subr.mxu0 0.0
    %185 = vmatpush1.msra.mxu0 0.0
    %186 = vmatprep.subr.mxu0 0.0
    %187 = vmatpush1.msra.mxu0 0.0
    %188 = vmatprep.subr.mxu0 0.0
    %189 = vmatpush1.msra.mxu0 0.0
    %190 = vmatprep.subr.mxu0 0.0
    %191 = vmatpush1.msra.mxu0 0.0
    %192 = vmatprep.subr.mxu0 0.0
    %193 = vmatpush1.msra.mxu0 0.0
    %194 = vmatprep.subr.mxu0 0.0
    %195 = vmatpush1.msra.mxu0 0.0
    %196 = vmatprep.subr.mxu0 0.0
    %197 = vmatpush1.msra.mxu0 0.0
    %198 = vmatprep.subr.mxu0 0.0
    %199 = vmatpush1.msra.mxu0 0.0
    %200 = vmatprep.subr.mxu0 0.0
    %201 = vmatpush1.msra.mxu0 0.0
    %202 = vmatprep.subr.mxu0 0.0
    %203 = vmatpush1.msra.mxu0 0.0
    %204 = vmatprep.subr.mxu0 0.0
    %205 = vmatpush1.msra.mxu0 0.0
    %206 = vmatprep.subr.mxu0 0.0
    %207 = vmatpush1.msra.mxu0 0.0
    %208 = vmatprep.subr.mxu0 0.0
    %209 = vmatpush1.msra.mxu0 0.0
    %210 = vmatprep.subr.mxu0 0.0
    %211 = vmatpush1.msra.mxu0 0.0
    %212 = vmatprep.subr.mxu0 0.0
    %213 = vmatpush1.msra.mxu0 0.0
    %214 = vmatprep.subr.mxu0 0.0
    %215 = vmatpush1.msra.mxu0 0.0
    %216 = vmatprep.mubr.f32.mxu0 0.0
    %217 = vmatmul.mubr.f32.gmra.mrb[0].mxu0 %v150
    %v218 = vpop.f32.mrb[0].mxu0
    %v219 = vadd.f32 %v146, %v218
    %v220 = vpop.f32.mrb[0].mxu0
    %221 = vdwg.mxu0
    %v222 = vmax.f32 %v219, 0.0
    %v223 = vld [vmem:[%s5] sm:$0xff]
    %v224 = vld [vmem:[%s5 + $0x8] sm:$0xff]
    %v225 = vld [vmem:[%s5 + $0x10] sm:$0xff]
    %v226 = vld [vmem:[%s5 + $0x18] sm:$0xff]
    %v227 = vld [vmem:[%s5 + $0x20] sm:$0xff]
    %v228 = vld [vmem:[%s5 + $0x28] sm:$0xff]
    %v229 = vld [vmem:[%s5 + $0x30] sm:$0xff]
    %v230 = vld [vmem:[%s5 + $0x38] sm:$0xff]
    %v231 = vld [vmem:[%s6] sm:$0x1]
    %v233 = vlaneseq
    %v234 = vshrl.u32 %v233, 7
    %v235 = vsub.s32 0, %v234
    %v236 = vrot.slane %v231, %v235
    %v239 = vsel %vm148, %v222, 0
    %241 = vmatprep.subr.mxu0 0.0
    %242 = vmatpush1.msra.mxu0 %v223
    %243 = vmatprep.subr.mxu0 0.0
    %244 = vmatpush1.msra.mxu0 %v224
    %245 = vmatprep.subr.mxu0 0.0
    %246 = vmatpush1.msra.mxu0 %v225
    %247 = vmatprep.subr.mxu0 0.0
    %248 = vmatpush1.msra.mxu0 %v226
    %249 = vmatprep.subr.mxu0 0.0
    %250 = vmatpush1.msra.mxu0 %v227
    %251 = vmatprep.subr.mxu0 0.0
    %252 = vmatpush1.msra.mxu0 %v228
    %253 = vmatprep.subr.mxu0 0.0
    %254 = vmatpush1.msra.mxu0 %v229
    %255 = vmatprep.subr.mxu0 0.0
    %256 = vmatpush1.msra.mxu0 %v230
    %257 = vmatprep.subr.mxu0 0.0
    %258 = vmatpush1.msra.mxu0 0.0
    %259 = vmatprep.subr.mxu0 0.0
    %260 = vmatpush1.msra.mxu0 0.0
    %261 = vmatprep.subr.mxu0 0.0
    %262 = vmatpush1.msra.mxu0 0.0
    %263 = vmatprep.subr.mxu0 0.0
    %264 = vmatpush1.msra.mxu0 0.0
    %265 = vmatprep.subr.mxu0 0.0
    %266 = vmatpush1.msra.mxu0 0.0
    %267 = vmatprep.subr.mxu0 0.0
    %268 = vmatpush1.msra.mxu0 0.0
    %269 = vmatprep.subr.mxu0 0.0
    %270 = vmatpush1.msra.mxu0 0.0
    %271 = vmatprep.subr.mxu0 0.0
    %272 = vmatpush1.msra.mxu0 0.0
    %273 = vmatprep.subr.mxu0 0.0
    %274 = vmatpush1.msra.mxu0 0.0
    %275 = vmatprep.subr.mxu0 0.0
    %276 = vmatpush1.msra.mxu0 0.0
    %277 = vmatprep.subr.mxu0 0.0
    %278 = vmatpush1.msra.mxu0 0.0
    %279 = vmatprep.subr.mxu0 0.0
    %280 = vmatpush1.msra.mxu0 0.0
    %281 = vmatprep.subr.mxu0 0.0
    %282 = vmatpush1.msra.mxu0 0.0
    %283 = vmatprep.subr.mxu0 0.0
    %284 = vmatpush1.msra.mxu0 0.0
    %285 = vmatprep.subr.mxu0 0.0
    %286 = vmatpush1.msra.mxu0 0.0
    %287 = vmatprep.subr.mxu0 0.0
    %288 = vmatpush1.msra.mxu0 0.0
    %289 = vmatprep.subr.mxu0 0.0
    %290 = vmatpush1.msra.mxu0 0.0
    %291 = vmatprep.subr.mxu0 0.0
    %292 = vmatpush1.msra.mxu0 0.0
    %293 = vmatprep.subr.mxu0 0.0
    %294 = vmatpush1.msra.mxu0 0.0
    %295 = vmatprep.subr.mxu0 0.0
    %296 = vmatpush1.msra.mxu0 0.0
    %297 = vmatprep.subr.mxu0 0.0
    %298 = vmatpush1.msra.mxu0 0.0
    %299 = vmatprep.subr.mxu0 0.0
    %300 = vmatpush1.msra.mxu0 0.0
    %301 = vmatprep.subr.mxu0 0.0
    %302 = vmatpush1.msra.mxu0 0.0
    %303 = vmatprep.subr.mxu0 0.0
    %304 = vmatpush1.msra.mxu0 0.0
    %305 = vmatprep.mubr.f32.mxu0 0.0
    %306 = vmatmul.mubr.f32.gmra.mrb[0].mxu0 %v239
    %v307 = vpop.f32.mrb[0].mxu0
    %v308 = vadd.f32 %v236, %v307
    %v309 = vpop.f32.mrb[0].mxu0
    %310 = vdwg.mxu0
    %v311 = vmin.f32 %v308, 20.0
    %v312 = vmul.f32 %v311, 1.442695
    %v313 = vpow.pop %v312
    %v314 = vadd.f32 %v313, 1.0
    %v315 = vlog2.pop %v314
    %v316 = vmul.f32 %v315, 0.6931472
    %v317 = vmul.f32 -0.5, %v313
    %v318 = vadd.f32 %v317, 1.0
    %v319 = vmul.f32 %v318, %v313
    %v320 = vand.u32 2147483647, %v313
    %vm321 = vcmp.lt.f32.partialorder %v320, 0.0004427343
    %v322 = vsel %vm321, %v319, %v316
    %vm323 = vcmp.gt.f32.partialorder %v308, 20.0
    %v324 = vsel %vm323, %v308, %v322
    %vm325 = vcmask 113664
    %326 = vst.msk [vmem:[#allocation5] sm:$0xff] %vm325, %v324
    // Predicated region
    $region34: #{tpu_custom_call.1} parent=1 // pred_check
      _
    $region35: #{tpu_custom_call.1} parent=1 // pred_check_branch
      %328 = sbr.rel (0) target = $region37
    $region36: #{tpu_custom_call.1} parent=1 // pred_region
      %s330 = ssub.s32 128, 128
      %331 = vsyncadd [#allocation4], %s330
      %s333 = sshll.u32 [#allocation5], 4
      %s334 = int_to_ptr.vmem [resolvable:$true] %s333
      %336 = dma.vmem_to_hbm [thread:$0]  %s334, 128, %s7, [#allocation4]
    $region37: #{tpu_custom_call.1} parent=1 // pred_fallthru
      _
    // Predicated region
    $region38: #{tpu_custom_call.1} parent=1 // pred_check
      _
    $region39: #{tpu_custom_call.1} parent=1 // pred_check_branch
      %338 = sbr.rel (0) target = $region41
    $region40: #{tpu_custom_call.1} parent=1 // pred_region
      %339 = dma.done [#allocation4], 128
    $region41: #{tpu_custom_call.1} parent=1 // pred_fallthru
      _
    %340 = vsyncpa [#allocation3], 1
    %341 = vsyncpa [#allocation4], 1

</llo_original>
